<compile_context>
chip_gen: v5e
topology: v5e:2x2
jax: 0.10.0
libtpu: 0.0.40
codegen_flags: <defaults>
</compile_context>

<pallas_src>
import math
import functools

import jax
import jax.numpy as jnp
from jax.experimental import pallas as pl
from jax.experimental.pallas import tpu as pltpu


_INV_SQRT2 = 1.0 / math.sqrt(2.0)
_SQRT_2_OVER_PI = math.sqrt(2.0 / math.pi)


def _round_up(x, m):
    return ((x + m - 1) // m) * m


def _detect_tpu():
    """Best-effort VMEM-capacity detection with a conservative fallback."""
    vmem = None
    try:
        info = pltpu.get_tpu_info()
        vmem = getattr(info, "vmem_capacity_bytes", None)
    except Exception:
        vmem = None
    if not vmem:
        vmem = 64 * 1024 * 1024            # conservative (v7x-sized) fallback
    two_cores = vmem <= 64 * 1024 * 1024   # heuristic: 64 MiB VMEM part => 2 TCs/chip (v7x)
    return int(vmem), two_cores


def _vmem_estimate(tm, ti, H, I_full, x_bytes, w_bytes, out_bytes,
                   has_xmm, single_step):
    """Conservative VMEM footprint (bytes) of one grid step."""
    est = 2 * tm * H * x_bytes                        # x tile, double-buffered
    if has_xmm:
        est += 2 * tm * H * 2                         # pre-cast bf16 x tile
    est += 2 * tm * H * out_bytes                     # output tile, double-buffered
    if single_step:
        est += 2 * 2 * H * I_full * w_bytes           # resident W1 + W2 (dbuf alloc)
        est += tm * I_full * 4                        # f32 GELU intermediate
    else:
        est += 2 * 2 * H * ti * w_bytes               # streamed W1/W2 chunk buffers
        est += tm * H * 4                             # resident f32 accumulator
        est += tm * ti * 4                            # f32 GELU intermediate
    est += 8 * (I_full + 3 * H) * 4                   # biases / LN params (generous)
    return est


def ffn_kernel(*refs, eps, has_xmm, single_step, approx_gelu):
    if has_xmm:
        x_mm_ref, x_ref = refs[0], refs[1]
        rest = refs[2:]
    else:
        x_ref = refs[0]
        x_mm_ref = x_ref
        rest = refs[1:]
    w1_ref, b1_ref, w2_ref, b2_ref, gamma_ref, beta_ref, o_ref = rest[:7]
    acc_ref = None if single_step else rest[7]

    # dense_1 chunk: (tm, H) @ (H, ti) + (1, ti)   (MXU, f32 accumulation)
    h = jnp.dot(x_mm_ref[...], w1_ref[...], preferred_element_type=jnp.float32)
    h = h + b1_ref[...].astype(jnp.float32)

    if approx_gelu:
        # tanh-approx GELU: transcendental rides the EUP slot instead of loading the
        # VPU with the f32 erf polynomial.  Changes numerics vs torch's erf GELU.
        h = 0.5 * h * (1.0 + jnp.tanh(_SQRT_2_OVER_PI * (h + 0.044715 * h * h * h)))
    else:
        # exact-erf GELU, matching the PyTorch module.
        h = h * 0.5 * (1.0 + jax.lax.erf(h * _INV_SQRT2))

    # dense_2 chunk (MXU, f32 accumulation)
    part = jnp.dot(h.astype(w2_ref.dtype), w2_ref[...],
                   preferred_element_type=jnp.float32)

    def _finalize(y):
        y = y + b2_ref[...].astype(jnp.float32)
        # dropout is identity in eval mode
        # TODO(synk): training-mode dropout via pltpu.prng_random_bits if ever needed.
        z = y + x_ref[...].astype(jnp.float32)            # residual in f32
        mean = jnp.mean(z, axis=-1, keepdims=True)
        zc = z - mean
        var = jnp.mean(zc * zc, axis=-1, keepdims=True)
        zn = zc * jax.lax.rsqrt(var + eps)
        out = (zn * gamma_ref[...].astype(jnp.float32)
               + beta_ref[...].astype(jnp.float32))
        o_ref[...] = out.astype(o_ref.dtype)

    if single_step:
        _finalize(part)
    else:
        i = pl.program_id(1)
        n_i = pl.num_programs(1)

        @pl.when(i == 0)
        def _init():
            acc_ref[...] = jnp.zeros_like(acc_ref)

        acc_ref[...] += part

        @pl.when(i == n_i - 1)
        def _fin():
            _finalize(acc_ref[...])


def feed_forward(x, w1, b1, w2, b2, gamma, beta, *,
                 eps=1e-12, tm=None, ti=None, matmul_dtype=None,
                 vmem_limit_bytes=None, resident_weights=None,
                 approx_gelu=False):
    """x: (B, S, H).  w1: (H, I), b1: (I,), w2: (I, H), b2/gamma/beta: (H,).

    matmul_dtype: optional dtype (e.g. jnp.bfloat16) for the two MXU matmuls —
      recommended on v5e/v6e/v7x (halves streamed weight bytes); GELU / residual /
      LayerNorm always stay in f32.
    resident_weights: force (True/False) keeping W1/W2 fully resident in VMEM;
      default is an automatic VMEM-budget decision.
    """
    B, S, H = x.shape
    I = w1.shape[1]
    rows = B * S

    vmem_phys, two_cores = _detect_tpu()
    if vmem_limit_bytes is None:
        vmem_limit_bytes = min(int(0.80 * vmem_phys), 112 * 1024 * 1024)
    big_vmem = vmem_phys > 80 * 1024 * 1024            # v5e/v6e (128 MiB) vs v7x (64 MiB)
    if tm is None:
        tm = 2048 if big_vmem else 1024
    if ti is None:
        ti = 1024 if big_vmem else 512
    ti = max(128, (ti // 128) * 128)                    # streamed chunks: 128-lane multiples

    x_bytes = jnp.dtype(x.dtype).itemsize
    out_bytes = x_bytes
    w_bytes = (jnp.dtype(matmul_dtype).itemsize if matmul_dtype is not None
               else jnp.dtype(w1.dtype).itemsize)
    has_xmm = (matmul_dtype is not None
               and jnp.dtype(matmul_dtype) != jnp.dtype(x.dtype))

    budget = int(0.85 * vmem_limit_bytes)               # headroom for compiler temps
    tm_cap = min(tm, _round_up(rows, 8))

    def _fits(tm_try, single, ti_val):
        return _vmem_estimate(tm_try, ti_val, H, I, x_bytes, w_bytes, out_bytes,
                              has_xmm, single) <= budget

    def _shrink(tm_try, single, ti_val):
        while tm_try > 8 and not _fits(tm_try, single, ti_val):
            tm_try = max(8, _round_up(tm_try // 2, 8))
        return tm_try

    # --- decide whether W1/W2 stay fully resident in VMEM ----------------------
    if resident_weights is None:
        resident = (I <= ti) or (2 * 2 * H * I * w_bytes <= budget // 2)
    else:
        resident = bool(resident_weights)

    single_step = False
    tm_eff = tm_cap
    ti_eff = ti
    if resident:
        tm_try = _shrink(tm_cap, True, I)
        if _fits(tm_try, True, I) and (I <= ti or tm_try >= min(256, tm_cap)):
            single_step = True
            tm_eff = tm_try
            ti_eff = I
    if not single_step:
        ti_eff = min(ti, _round_up(I, 128))
        tm_eff = _shrink(tm_cap, False, ti_eff)

    # --- keep >= 2 row blocks so a 2-TC chip (v7x) shards the "parallel" axis ---
    if two_cores and rows >= 256 and _round_up(rows, tm_eff) // tm_eff < 2:
        tm_eff = _round_up((rows + 1) // 2, 8)

    rows_p = _round_up(rows, tm_eff)
    n_r = rows_p // tm_eff
    I_p = I if single_step else _round_up(I, ti_eff)
    n_i = 1 if single_step else I_p // ti_eff

    # --- data prep (production callers should pre-pad / pre-layout weights once) --
    x2 = x.reshape(rows, H)
    if rows_p != rows:
        # padded rows are sliced off; LayerNorm on them is finite because eps > 0.
        x2 = jnp.pad(x2, ((0, rows_p - rows), (0, 0)))

    w1_p, b1_p, w2_p = w1, b1, w2
    if I_p != I:
        # zero-padding is exact: gelu(0) = 0 and zero W2 rows contribute nothing.
        w1_p = jnp.pad(w1, ((0, 0), (0, I_p - I)))
        b1_p = jnp.pad(b1, ((0, I_p - I),))
        w2_p = jnp.pad(w2, ((0, I_p - I), (0, 0)))
    if matmul_dtype is not None:
        w1_p = w1_p.astype(matmul_dtype)
        w2_p = w2_p.astype(matmul_dtype)

    # chunk-major W1 so each streamed i-chunk is one contiguous DMA slab.
    if n_i > 1:
        w1_r = w1_p.reshape(H, n_i, ti_eff).transpose(1, 0, 2)
    else:
        w1_r = w1_p.reshape(1, H, I_p)

    b1_2 = b1_p.reshape(1, I_p).astype(jnp.float32)
    b2_2 = b2.reshape(1, H).astype(jnp.float32)
    gamma_2 = gamma.reshape(1, H).astype(jnp.float32)
    beta_2 = beta.reshape(1, H).astype(jnp.float32)

    inputs = []
    if has_xmm:
        inputs.append(x2.astype(matmul_dtype))        # pre-cast once, not per i-step
    inputs.append(x2)                                  # f32 x kept for the residual/LN
    inputs += [w1_r, b1_2, w2_p, b2_2, gamma_2, beta_2]

    if single_step:
        grid = (n_r,)
        dim_sem = ("parallel",)
        x_map = lambda r: (r, 0)
        w1_map = lambda r: (0, 0, 0)
        b1_map = lambda r: (0, 0)
        w2_map = lambda r: (0, 0)
        vec_map = lambda r: (0, 0)
        out_map = lambda r: (r, 0)
        scratch = []
    else:
        grid = (n_r, n_i)
        dim_sem = ("parallel", "arbitrary")
        x_map = lambda r, i: (r, 0)                    # resident over i
        w1_map = lambda r, i: (i, 0, 0)                # streamed, contiguous chunk
        b1_map = lambda r, i: (0, i)
        w2_map = lambda r, i: (i, 0)                   # streamed, row-contiguous
        vec_map = lambda r, i: (0, 0)
        out_map = lambda r, i: (r, 0)
        scratch = [pltpu.VMEM((tm_eff, H), jnp.float32)]   # resident f32 accumulator

    in_specs = []
    if has_xmm:
        in_specs.append(pl.BlockSpec((tm_eff, H), x_map))   # bf16 x for the MXU
    in_specs += [
        pl.BlockSpec((tm_eff, H), x_map),                   # f32 x for the residual
        pl.BlockSpec((None, H, ti_eff), w1_map),            # W1 chunk (leading dim squeezed)
        pl.BlockSpec((1, ti_eff), b1_map),
        pl.BlockSpec((ti_eff, H), w2_map),
        pl.BlockSpec((1, H), vec_map),                      # b2
        pl.BlockSpec((1, H), vec_map),                      # LayerNorm gamma
        pl.BlockSpec((1, H), vec_map),                      # LayerNorm beta
    ]

    kernel = functools.partial(ffn_kernel, eps=eps, has_xmm=has_xmm,
                               single_step=single_step, approx_gelu=approx_gelu)

    out2 = pl.pallas_call(
        kernel,
        out_shape=jax.ShapeDtypeStruct((rows_p, H), x.dtype),
        grid_spec=pltpu.PrefetchScalarGridSpec(
            num_scalar_prefetch=0,
            grid=grid,
            in_specs=in_specs,
            out_specs=pl.BlockSpec((tm_eff, H), out_map),
            scratch_shapes=scratch,
        ),
        compiler_params=pltpu.CompilerParams(
            dimension_semantics=dim_sem,
            vmem_limit_bytes=vmem_limit_bytes,
        ),
    )(*inputs)

    return out2[:rows].reshape(B, S, H)


def _reference(x, w1, b1, w2, b2, gamma, beta, eps):
    h = x @ w1 + b1
    h = h * 0.5 * (1.0 + jax.lax.erf(h / math.sqrt(2.0)))
    y = h @ w2 + b2
    z = y + x
    mean = jnp.mean(z, axis=-1, keepdims=True)
    var = jnp.mean((z - mean) ** 2, axis=-1, keepdims=True)
    return (z - mean) / jnp.sqrt(var + eps) * gamma + beta


def _make_params(key, H, I):
    kw1, kb1, kw2, kb2 = jax.random.split(key, 4)
    w1 = jax.random.normal(kw1, (H, I), dtype=jnp.float32) * 0.05
    b1 = jax.random.normal(kb1, (I,), dtype=jnp.float32) * 0.01
    w2 = jax.random.normal(kw2, (I, H), dtype=jnp.float32) * 0.05
    b2 = jax.random.normal(kb2, (H,), dtype=jnp.float32) * 0.01
    gamma = jnp.ones((H,), dtype=jnp.float32)
    beta = jnp.zeros((H,), dtype=jnp.float32)
    return w1, b1, w2, b2, gamma, beta


if __name__ == "__main__":
    EPS = 1e-12  # matches the module's layer_norm_eps constructor argument

    # --- test 1: module-consistent small shapes, f32, resident-weights single-step path ---
    B, S, H, I = 2, 8, 32, 64
    key = jax.random.PRNGKey(0)
    kx, kp = jax.random.split(key)
    x = jax.random.normal(kx, (B, S, H), dtype=jnp.float32)
    params = _make_params(kp, H, I)

    out = jax.block_until_ready(feed_forward(x, *params, eps=EPS))
    ref = _reference(x, *params, EPS)
    assert out.shape == (B, S, H)
    assert jnp.allclose(out, ref, atol=1e-4, rtol=1e-4), "f32 resident mismatch vs reference"

    # --- test 2: non-divisible rows + forced I streaming (2 i-steps, accumulator path) ---
    B2, S2, H2, I2 = 3, 5, 32, 192
    kx2, kp2 = jax.random.split(jax.random.PRNGKey(1))
    x2 = jax.random.normal(kx2, (B2, S2, H2), dtype=jnp.float32)
    p2 = _make_params(kp2, H2, I2)
    out2 = jax.block_until_ready(
        feed_forward(x2, *p2, eps=EPS, ti=128, resident_weights=False))
    ref2 = _reference(x2, *p2, EPS)
    assert out2.shape == (B2, S2, H2)
    assert jnp.allclose(out2, ref2, atol=1e-4, rtol=1e-4), "streamed-I mismatch vs reference"

    # --- test 3: bf16 MXU path, resident weights, pre-cast x_mm input, f32 residual/LN ---
    out3 = jax.block_until_ready(
        feed_forward(x, *params, eps=EPS, matmul_dtype=jnp.bfloat16))
    assert jnp.allclose(out3, ref, atol=3e-2, rtol=3e-2), "bf16 resident mismatch vs reference"

    # --- test 4: bf16 MXU path + forced I streaming (x_mm + accumulator variant) ---------
    out4 = jax.block_until_ready(
        feed_forward(x2, *p2, eps=EPS, ti=128, resident_weights=False,
                     matmul_dtype=jnp.bfloat16))
    assert jnp.allclose(out4, ref2, atol=3e-2, rtol=3e-2), "bf16 streamed mismatch vs reference"

    print("KERNEL_OK")
</pallas_src>

<mosaic_0001>
module attributes {stable_mosaic.version = 11 : i64} {
  func.func @ffn_kernel(%arg0: i32, %arg1: memref<16x32xf32, #tpu.memory_space<vmem>>, %arg2: memref<1x32x64xf32, #tpu.memory_space<vmem>>, %arg3: memref<1x64xf32, #tpu.memory_space<vmem>>, %arg4: memref<64x32xf32, #tpu.memory_space<vmem>>, %arg5: memref<1x32xf32, #tpu.memory_space<vmem>>, %arg6: memref<1x32xf32, #tpu.memory_space<vmem>>, %arg7: memref<1x32xf32, #tpu.memory_space<vmem>>, %arg8: memref<16x32xf32, #tpu.memory_space<vmem>>) attributes {dimension_semantics = [#tpu.dimension_semantics<parallel>], iteration_bounds = array<i64: 1>, scalar_prefetch = 0 : i64, scratch_operands = 0 : i64, tpu.core_type = #tpu.core_type<tc>, window_params = [{transform_indices = @transform_0, window_bounds = array<i64: 16, 32>}, {pipeline_mode = #tpu.pipeline_mode<synchronous>, transform_indices = @transform_1, window_bounds = array<i64: 1, 32, 64>}, {pipeline_mode = #tpu.pipeline_mode<synchronous>, transform_indices = @transform_2, window_bounds = array<i64: 1, 64>}, {pipeline_mode = #tpu.pipeline_mode<synchronous>, transform_indices = @transform_3, window_bounds = array<i64: 64, 32>}, {pipeline_mode = #tpu.pipeline_mode<synchronous>, transform_indices = @transform_4, window_bounds = array<i64: 1, 32>}, {pipeline_mode = #tpu.pipeline_mode<synchronous>, transform_indices = @transform_5, window_bounds = array<i64: 1, 32>}, {pipeline_mode = #tpu.pipeline_mode<synchronous>, transform_indices = @transform_6, window_bounds = array<i64: 1, 32>}, {transform_indices = @transform_7, window_bounds = array<i64: 16, 32>}]} {
    %c0 = arith.constant 0 : index
    %c0_0 = arith.constant 0 : index
    %0 = vector.load %arg1[%c0, %c0_0] : memref<16x32xf32, #tpu.memory_space<vmem>>, vector<16x32xf32>
    %c0_1 = arith.constant 0 : index
    %c0_2 = arith.constant 0 : index
    %c0_3 = arith.constant 0 : index
    %1 = vector.load %arg2[%c0_1, %c0_2, %c0_3] : memref<1x32x64xf32, #tpu.memory_space<vmem>>, vector<1x32x64xf32>
    %2 = vector.shape_cast %1 : vector<1x32x64xf32> to vector<32x64xf32>
    %cst = arith.constant dense<0.000000e+00> : vector<16x64xf32>
    %3 = tpu.matmul %0, %2, %cst {dimension_numbers = #tpu.dot_dimension_numbers<[1], [0], [0], [1], [0, 0, 1, 1], [], []>} : vector<16x32xf32>, vector<32x64xf32>, vector<16x64xf32> -> vector<16x64xf32>
    %c0_4 = arith.constant 0 : index
    %c0_5 = arith.constant 0 : index
    %4 = vector.load %arg3[%c0_4, %c0_5] : memref<1x64xf32, #tpu.memory_space<vmem>>, vector<1x64xf32>
    %5 = vector.broadcast %4 : vector<1x64xf32> to vector<16x64xf32>
    %6 = arith.addf %3, %5 : vector<16x64xf32>
    %cst_6 = arith.constant 5.000000e-01 : f32
    %7 = vector.broadcast %cst_6 : f32 to vector<16x64xf32>
    %8 = arith.mulf %6, %7 : vector<16x64xf32>
    %cst_7 = arith.constant 0.707106769 : f32
    %9 = vector.broadcast %cst_7 : f32 to vector<16x64xf32>
    %10 = arith.mulf %6, %9 : vector<16x64xf32>
    %11 = math.erf %10 : vector<16x64xf32>
    %cst_8 = arith.constant 1.000000e+00 : f32
    %12 = vector.broadcast %cst_8 : f32 to vector<16x64xf32>
    %13 = arith.addf %12, %11 : vector<16x64xf32>
    %14 = arith.mulf %8, %13 : vector<16x64xf32>
    %c0_9 = arith.constant 0 : index
    %c0_10 = arith.constant 0 : index
    %15 = vector.load %arg4[%c0_9, %c0_10] : memref<64x32xf32, #tpu.memory_space<vmem>>, vector<64x32xf32>
    %cst_11 = arith.constant dense<0.000000e+00> : vector<16x32xf32>
    %16 = tpu.matmul %14, %15, %cst_11 {dimension_numbers = #tpu.dot_dimension_numbers<[1], [0], [0], [1], [0, 0, 1, 1], [], []>} : vector<16x64xf32>, vector<64x32xf32>, vector<16x32xf32> -> vector<16x32xf32>
    %c0_12 = arith.constant 0 : index
    %c0_13 = arith.constant 0 : index
    %17 = vector.load %arg5[%c0_12, %c0_13] : memref<1x32xf32, #tpu.memory_space<vmem>>, vector<1x32xf32>
    %18 = vector.broadcast %17 : vector<1x32xf32> to vector<16x32xf32>
    %19 = arith.addf %16, %18 : vector<16x32xf32>
    %c0_14 = arith.constant 0 : index
    %c0_15 = arith.constant 0 : index
    %20 = vector.load %arg1[%c0_14, %c0_15] : memref<16x32xf32, #tpu.memory_space<vmem>>, vector<16x32xf32>
    %21 = arith.addf %19, %20 : vector<16x32xf32>
    %cst_16 = arith.constant dense<0.000000e+00> : vector<16xf32>
    %22 = vector.multi_reduction <add>, %21, %cst_16 [1] : vector<16x32xf32> to vector<16xf32>
    %23 = vector.shape_cast %22 : vector<16xf32> to vector<16x1xf32>
    %cst_17 = arith.constant 3.200000e+01 : f32
    %24 = vector.broadcast %cst_17 : f32 to vector<16x1xf32>
    %25 = arith.divf %23, %24 : vector<16x1xf32>
    %26 = vector.broadcast %25 : vector<16x1xf32> to vector<16x32xf32>
    %27 = arith.subf %21, %26 : vector<16x32xf32>
    %28 = arith.mulf %27, %27 : vector<16x32xf32>
    %cst_18 = arith.constant dense<0.000000e+00> : vector<16xf32>
    %29 = vector.multi_reduction <add>, %28, %cst_18 [1] : vector<16x32xf32> to vector<16xf32>
    %30 = vector.shape_cast %29 : vector<16xf32> to vector<16x1xf32>
    %cst_19 = arith.constant 3.200000e+01 : f32
    %31 = vector.broadcast %cst_19 : f32 to vector<16x1xf32>
    %32 = arith.divf %30, %31 : vector<16x1xf32>
    %cst_20 = arith.constant 9.99999996E-13 : f32
    %33 = vector.broadcast %cst_20 : f32 to vector<16x1xf32>
    %34 = arith.addf %32, %33 : vector<16x1xf32>
    %35 = math.rsqrt %34 : vector<16x1xf32>
    %36 = vector.broadcast %35 : vector<16x1xf32> to vector<16x32xf32>
    %37 = arith.mulf %27, %36 : vector<16x32xf32>
    %c0_21 = arith.constant 0 : index
    %c0_22 = arith.constant 0 : index
    %38 = vector.load %arg6[%c0_21, %c0_22] : memref<1x32xf32, #tpu.memory_space<vmem>>, vector<1x32xf32>
    %39 = vector.broadcast %38 : vector<1x32xf32> to vector<16x32xf32>
    %40 = arith.mulf %37, %39 : vector<16x32xf32>
    %c0_23 = arith.constant 0 : index
    %c0_24 = arith.constant 0 : index
    %41 = vector.load %arg7[%c0_23, %c0_24] : memref<1x32xf32, #tpu.memory_space<vmem>>, vector<1x32xf32>
    %42 = vector.broadcast %41 : vector<1x32xf32> to vector<16x32xf32>
    %43 = arith.addf %40, %42 : vector<16x32xf32>
    %c0_25 = arith.constant 0 : index
    %c0_26 = arith.constant 0 : index
    %44 = vector.load %arg8[%c0_25, %c0_26] : memref<16x32xf32, #tpu.memory_space<vmem>>, vector<16x32xf32>
    tpu.vector_store %arg8[%c0_25, %c0_26], %43 {strides = array<i32>} : memref<16x32xf32, #tpu.memory_space<vmem>>, vector<16x32xf32>,
    return
  }
  func.func @transform_0(%arg0: i32) -> (i32, i32) {
    %c0_i32 = arith.constant 0 : i32
    %c0_i32_0 = arith.constant 0 : i32
    return %arg0, %c0_i32 : i32, i32
  }
  func.func @transform_1(%arg0: i32) -> (i32, i32, i32) {
    %c0_i32 = arith.constant 0 : i32
    %c0_i32_0 = arith.constant 0 : i32
    %c0_i32_1 = arith.constant 0 : i32
    %c0_i32_2 = arith.constant 0 : i32
    return %c0_i32, %c0_i32_0, %c0_i32_1 : i32, i32, i32
  }
  func.func @transform_2(%arg0: i32) -> (i32, i32) {
    %c0_i32 = arith.constant 0 : i32
    %c0_i32_0 = arith.constant 0 : i32
    %c0_i32_1 = arith.constant 0 : i32
    return %c0_i32, %c0_i32_0 : i32, i32
  }
  func.func @transform_3(%arg0: i32) -> (i32, i32) {
    %c0_i32 = arith.constant 0 : i32
    %c0_i32_0 = arith.constant 0 : i32
    %c0_i32_1 = arith.constant 0 : i32
    return %c0_i32, %c0_i32_0 : i32, i32
  }
  func.func @transform_4(%arg0: i32) -> (i32, i32) {
    %c0_i32 = arith.constant 0 : i32
    %c0_i32_0 = arith.constant 0 : i32
    %c0_i32_1 = arith.constant 0 : i32
    return %c0_i32, %c0_i32_0 : i32, i32
  }
  func.func @transform_5(%arg0: i32) -> (i32, i32) {
    %c0_i32 = arith.constant 0 : i32
    %c0_i32_0 = arith.constant 0 : i32
    %c0_i32_1 = arith.constant 0 : i32
    return %c0_i32, %c0_i32_0 : i32, i32
  }
  func.func @transform_6(%arg0: i32) -> (i32, i32) {
    %c0_i32 = arith.constant 0 : i32
    %c0_i32_0 = arith.constant 0 : i32
    %c0_i32_1 = arith.constant 0 : i32
    return %c0_i32, %c0_i32_0 : i32, i32
  }
  func.func @transform_7(%arg0: i32) -> (i32, i32) {
    %c0_i32 = arith.constant 0 : i32
    %c0_i32_0 = arith.constant 0 : i32
    return %arg0, %c0_i32 : i32, i32
  }
}

</mosaic_0001>

<llo_original>
// kernel: tpu_custom_call.1
$region0: #{tpu_custom_call.1}
  #allocation0 [shape = 'u32[]', space=smem, size = 0x4, offset = 0x4, fixed_abs, tag = 'smem constant byte address 0x4 - core index']
  #allocation1 [shape = 'u32[72,128]{1,0:T(1,128)}', space=vmem, size = 0x9000, scoped, tag = 'internal scratch']
  %s0 = inlined_call_operand.vmem [shape: f32[16,32], index: 0, kind: input, shape index: {}]
  %s1 = inlined_call_operand.vmem [shape: f32[1,32,64], index: 1, kind: input, shape index: {}]
  %s2 = inlined_call_operand.vmem [shape: f32[1,64], index: 2, kind: input, shape index: {}]
  %s3 = inlined_call_operand.vmem [shape: f32[64,32], index: 3, kind: input, shape index: {}]
  %s4 = inlined_call_operand.vmem [shape: f32[1,32], index: 4, kind: input, shape index: {}]
  %s5 = inlined_call_operand.vmem [shape: f32[1,32], index: 5, kind: input, shape index: {}]
  %s6 = inlined_call_operand.vmem [shape: f32[1,32], index: 6, kind: input, shape index: {}]
  %s7 = inlined_call_operand.hbm [shape: f32[16,32], index: 7, kind: output, shape index: {}]
  %s8 = sld [smem:[#allocation0]]
  $region38: #{tpu_custom_call.1} parent=0
    _
  %s10 = ssub.s32 1, %s8
  %s11 = scalar_select 0, %s10, %s8
  $region1: #{tpu_custom_call.1} parent=0
    #allocation2 [shape = 'u8[8192]{0}', space=vmem, size = 0x2000, scoped, tag = 'output window, operand 0, single buffered']
    #allocation3 [shape = 's32[1]{0}', space=sflag, size = 0x4, scoped, tag = 'scoped memory for tpu_custom_call.1']
    %12 = vsyncpa [#allocation3], 0
    // Predicated region
    $region2: #{tpu_custom_call.1} parent=1 // pred_check
      _
    $region3: #{tpu_custom_call.1} parent=1 // pred_check_branch
      %14 = sbr.rel (0) target = $region5
    $region4: #{tpu_custom_call.1} parent=1 // pred_region
      _
    $region5: #{tpu_custom_call.1} parent=1 // pred_fallthru
      _
    // Predicated region
    $region6: #{tpu_custom_call.1} parent=1 // pred_check
      _
    $region7: #{tpu_custom_call.1} parent=1 // pred_check_branch
      %16 = sbr.rel (0) target = $region9
    $region8: #{tpu_custom_call.1} parent=1 // pred_region
      _
    $region9: #{tpu_custom_call.1} parent=1 // pred_fallthru
      _
    // Predicated region
    $region10: #{tpu_custom_call.1} parent=1 // pred_check
      _
    $region11: #{tpu_custom_call.1} parent=1 // pred_check_branch
      %18 = sbr.rel (0) target = $region13
    $region12: #{tpu_custom_call.1} parent=1 // pred_region
      _
    $region13: #{tpu_custom_call.1} parent=1 // pred_fallthru
      _
    // Predicated region
    $region14: #{tpu_custom_call.1} parent=1 // pred_check
      _
    $region15: #{tpu_custom_call.1} parent=1 // pred_check_branch
      %20 = sbr.rel (0) target = $region17
    $region16: #{tpu_custom_call.1} parent=1 // pred_region
      _
    $region17: #{tpu_custom_call.1} parent=1 // pred_fallthru
      _
    // Predicated region
    $region18: #{tpu_custom_call.1} parent=1 // pred_check
      _
    $region19: #{tpu_custom_call.1} parent=1 // pred_check_branch
      %22 = sbr.rel (0) target = $region21
    $region20: #{tpu_custom_call.1} parent=1 // pred_region
      _
    $region21: #{tpu_custom_call.1} parent=1 // pred_fallthru
      _
    // Predicated region
    $region22: #{tpu_custom_call.1} parent=1 // pred_check
      _
    $region23: #{tpu_custom_call.1} parent=1 // pred_check_branch
      %24 = sbr.rel (0) target = $region25
    $region24: #{tpu_custom_call.1} parent=1 // pred_region
      _
    $region25: #{tpu_custom_call.1} parent=1 // pred_fallthru
      _
    // Predicated region
    $region26: #{tpu_custom_call.1} parent=1 // pred_check
      _
    $region27: #{tpu_custom_call.1} parent=1 // pred_check_branch
      %26 = sbr.rel (0) target = $region29
    $region28: #{tpu_custom_call.1} parent=1 // pred_region
      _
    $region29: #{tpu_custom_call.1} parent=1 // pred_fallthru
      _
    %v27 = vld [vmem:[%s0] sm:$0xff]
    %v28 = vld [vmem:[%s0 + $0x8] sm:$0xff]
    %v29 = vld [vmem:[%s1] sm:$0xff]
    %v30 = vld [vmem:[%s1 + $0x8] sm:$0xff]
    %v31 = vld [vmem:[%s1 + $0x10] sm:$0xff]
    %v32 = vld [vmem:[%s1 + $0x18] sm:$0xff]
    %v33 = vld [vmem:[%s2] sm:$0x1]
    %v35 = vperm.slane %v33, 0
    %vm37 = vcmask 261120
    %v39 = vsel %vm37, %v27, 0
    %v42 = vsel %vm37, %v28, 0
    %44 = vmatpush.msra.mxu0 0.0
    %45 = vmatpush.msra.mxu0 0.0
    %46 = vmatpush.msra.mxu0 0.0
    %47 = vmatpush.msra.mxu0 0.0
    %48 = vmatpush.msra.mxu0 0.0
    %49 = vmatpush.msra.mxu0 0.0
    %50 = vmatpush.msra.mxu0 0.0
    %51 = vmatpush.msra.mxu0 0.0
    %52 = vmatpush.msra.mxu0 0.0
    %53 = vmatpush.msra.mxu0 0.0
    %54 = vmatpush.msra.mxu0 0.0
    %55 = vmatpush.msra.mxu0 0.0
    %56 = vmatpush.msra.mxu0 %v32
    %57 = vmatpush.msra.mxu0 %v31
    %58 = vmatpush.msra.mxu0 %v30
    %59 = vmatpush.msra.mxu0 %v29
    %60 = vmatmul.f32.gmra.mxu0 %v39
    %v61 = vpop.f32.mrf.mxu0
    %v62 = vadd.f32 %v35, %v61
    %63 = vmatmul.f32.gmra.mxu0 %v42
    %v64 = vpop.f32.mrf.mxu0
    %v65 = vadd.f32 %v35, %v64
    %66 = vdwg.mxu0
    %v67 = vmul.f32 %v62, 0.5
    %v68 = vmul.f32 %v65, 0.5
    %v69 = vmul.f32 %v62, 0.70710677
    %v70 = vmul.f32 %v65, 0.70710677
    %v71 = vmul.f32 %v69, %v69
    %v72 = vmin.f32 16.0, %v71
    %v73 = vmul.f32 %v72, 2.1237322e-06
    %v74 = vadd.f32 %v73, 0.00028619796
    %v75 = vmul.f32 %v72, %v74
    %v76 = vadd.f32 %v75, 0.0036580483
    %v77 = vmul.f32 %v72, %v76
    %v78 = vadd.f32 %v77, 0.05243302
    %v79 = vmul.f32 %v72, %v78
    %v80 = vadd.f32 %v79, 0.18741608
    %v81 = vmul.f32 %v72, %v80
    %v82 = vadd.f32 %v81, 1.1283791
    %v83 = vmul.f32 %v69, %v82
    %v84 = vmul.f32 %v72, 3.8918573e-05
    %v85 = vadd.f32 %v84, 0.001143296
    %v86 = vmul.f32 %v72, %v85
    %v87 = vadd.f32 %v86, 0.014752088
    %v88 = vmul.f32 %v72, %v87
    %v89 = vadd.f32 %v88, 0.112945676
    %v90 = vmul.f32 %v72, %v89
    %v91 = vadd.f32 %v90, 0.4994258
    %v92 = vmul.f32 %v72, %v91
    %v93 = vadd.f32 %v92, 1.0
    %v94 = vrcp.pop %v93
    %v95 = vmul.f32 %v93, %v94
    %v96 = vsub.f32 1.0, %v95
    %v97 = vmul.f32 %v94, %v96
    %v98 = vadd.f32 %v94, %v97
    %vm99 = vweird.f32 %v93
    %vm100 = vweird.f32 %v94
    %vm101 = vmor %vm99, %vm100
    %v102 = vsel %vm101, %v94, %v98
    %v103 = vand.u32 2147483647, %v93
    %vm104 = vcmp.eq.f32.partialorder %v103, 8.507059e+37
    %v105 = vand.u32 %v93, 2147483648
    %v106 = vor.u32 1.1754944e-38, %v105
    %v107 = vsel %vm104, %v106, %v102
    %v108 = vmul.f32 %v83, %v107
    %v109 = vmin.f32 %v108, 1.0
    %v110 = vmax.f32 %v109, -1.0
    %v111 = vmul.f32 %v70, %v70
    %v112 = vmin.f32 16.0, %v111
    %v113 = vmul.f32 %v112, 2.1237322e-06
    %v114 = vadd.f32 %v113, 0.00028619796
    %v115 = vmul.f32 %v112, %v114
    %v116 = vadd.f32 %v115, 0.0036580483
    %v117 = vmul.f32 %v112, %v116
    %v118 = vadd.f32 %v117, 0.05243302
    %v119 = vmul.f32 %v112, %v118
    %v120 = vadd.f32 %v119, 0.18741608
    %v121 = vmul.f32 %v112, %v120
    %v122 = vadd.f32 %v121, 1.1283791
    %v123 = vmul.f32 %v70, %v122
    %v124 = vmul.f32 %v112, 3.8918573e-05
    %v125 = vadd.f32 %v124, 0.001143296
    %v126 = vmul.f32 %v112, %v125
    %v127 = vadd.f32 %v126, 0.014752088
    %v128 = vmul.f32 %v112, %v127
    %v129 = vadd.f32 %v128, 0.112945676
    %v130 = vmul.f32 %v112, %v129
    %v131 = vadd.f32 %v130, 0.4994258
    %v132 = vmul.f32 %v112, %v131
    %v133 = vadd.f32 %v132, 1.0
    %v134 = vrcp.pop %v133
    %v135 = vmul.f32 %v133, %v134
    %v136 = vsub.f32 1.0, %v135
    %v137 = vmul.f32 %v134, %v136
    %v138 = vadd.f32 %v134, %v137
    %vm139 = vweird.f32 %v133
    %vm140 = vweird.f32 %v134
    %vm141 = vmor %vm139, %vm140
    %v142 = vsel %vm141, %v134, %v138
    %v143 = vand.u32 2147483647, %v133
    %vm144 = vcmp.eq.f32.partialorder %v143, 8.507059e+37
    %v145 = vand.u32 %v133, 2147483648
    %v146 = vor.u32 1.1754944e-38, %v145
    %v147 = vsel %vm144, %v146, %v142
    %v148 = vmul.f32 %v123, %v147
    %v149 = vmin.f32 %v148, 1.0
    %v150 = vmax.f32 %v149, -1.0
    %v151 = vadd.f32 %v110, 1.0
    %v152 = vadd.f32 %v150, 1.0
    %v153 = vmul.f32 %v67, %v151
    %v154 = vmul.f32 %v68, %v152
    %v155 = vld [vmem:[%s3] sm:$0xff]
    %v156 = vld [vmem:[%s3 + $0x8] sm:$0xff]
    %v157 = vld [vmem:[%s3 + $0x10] sm:$0xff]
    %v158 = vld [vmem:[%s3 + $0x18] sm:$0xff]
    %v159 = vld [vmem:[%s3 + $0x20] sm:$0xff]
    %v160 = vld [vmem:[%s3 + $0x28] sm:$0xff]
    %v161 = vld [vmem:[%s3 + $0x30] sm:$0xff]
    %v162 = vld [vmem:[%s3 + $0x38] sm:$0xff]
    %v163 = vld [vmem:[%s4] sm:$0x1]
    %v165 = vperm.slane %v163, 0
    %vm167 = vcmask 523264
    %v169 = vsel %vm167, %v153, 0
    %v172 = vsel %vm167, %v154, 0
    %174 = vmatpush.msra.mxu0 0.0
    %175 = vmatpush.msra.mxu0 0.0
    %176 = vmatpush.msra.mxu0 0.0
    %177 = vmatpush.msra.mxu0 0.0
    %178 = vmatpush.msra.mxu0 0.0
    %179 = vmatpush.msra.mxu0 0.0
    %180 = vmatpush.msra.mxu0 0.0
    %181 = vmatpush.msra.mxu0 0.0
    %182 = vmatpush.msra.mxu0 %v162
    %183 = vmatpush.msra.mxu0 %v161
    %184 = vmatpush.msra.mxu0 %v160
    %185 = vmatpush.msra.mxu0 %v159
    %186 = vmatpush.msra.mxu0 %v158
    %187 = vmatpush.msra.mxu0 %v157
    %188 = vmatpush.msra.mxu0 %v156
    %189 = vmatpush.msra.mxu0 %v155
    %190 = vmatmul.f32.gmra.mxu0 %v169
    %v191 = vpop.f32.mrf.mxu0
    %v192 = vadd.f32 %v165, %v191
    %193 = vmatmul.f32.gmra.mxu0 %v172
    %v194 = vpop.f32.mrf.mxu0
    %v195 = vadd.f32 %v165, %v194
    %196 = vdwg.mxu0
    %v197 = vadd.f32 %v192, %v27
    %v198 = vadd.f32 %v195, %v28
    %v199 = vsel %vm37, %v197, 0.0
    %200 = vadd.xlane.f32.xlu0 %v199
    %v201 = vpop.xlane.xlu0 %200
    %v202 = vsel %vm37, %v198, 0.0
    %203 = vadd.xlane.f32.xlu0 %v202
    %v204 = vpop.xlane.xlu0 %203
    %v205 = vrcp.pop 32.0
    %v206 = vmul.f32 32.0, %v205
    %v207 = vsub.f32 1.0, %v206
    %v208 = vmul.f32 %v205, %v207
    %v209 = vadd.f32 %v205, %v208
    %vm210 = vweird.f32 %v205
    %v211 = vsel %vm210, %v205, %v209
    %v212 = vmul.f32 %v201, %v211
    %v213 = vmul.f32 %v204, %v211
    %v214 = vsub.f32 %v197, %v212
    %v215 = vsub.f32 %v198, %v213
    %v216 = vmul.f32 %v214, %v214
    %v217 = vmul.f32 %v215, %v215
    %v218 = vsel %vm37, %v216, 0.0
    %219 = vadd.xlane.f32.xlu0 %v218
    %v220 = vpop.xlane.xlu0 %219
    %v221 = vsel %vm37, %v217, 0.0
    %222 = vadd.xlane.f32.xlu0 %v221
    %v223 = vpop.xlane.xlu0 %222
    %v224 = vmul.f32 %v220, %v211
    %v225 = vmul.f32 %v223, %v211
    %v226 = vadd.f32 %v224, 1e-12
    %v227 = vadd.f32 %v225, 1e-12
    %v228 = vrsqrt.pop %v226
    %v229 = vmul.f32 %v228, %v226
    %v230 = vmul.f32 %v229, %v228
    %v231 = vmul.f32 0.5, %v230
    %v232 = vsub.f32 1.5, %v231
    %v233 = vmul.f32 %v228, %v232
    %vm234 = vweird.f32 %v226
    %vm235 = vweird.f32 %v228
    %vm236 = vmor %vm234, %vm235
    %v237 = vsel %vm236, %v228, %v233
    %v238 = vrsqrt.pop %v227
    %v239 = vmul.f32 %v238, %v227
    %v240 = vmul.f32 %v239, %v238
    %v241 = vmul.f32 0.5, %v240
    %v242 = vsub.f32 1.5, %v241
    %v243 = vmul.f32 %v238, %v242
    %vm244 = vweird.f32 %v227
    %vm245 = vweird.f32 %v238
    %vm246 = vmor %vm244, %vm245
    %v247 = vsel %vm246, %v238, %v243
    %v248 = vmul.f32 %v214, %v237
    %v249 = vmul.f32 %v215, %v247
    %v250 = vld [vmem:[%s5] sm:$0x1]
    %v252 = vperm.slane %v250, 0
    %v254 = vmul.f32 %v248, %v252
    %v255 = vmul.f32 %v249, %v252
    %v256 = vld [vmem:[%s6] sm:$0x1]
    %v258 = vperm.slane %v256, 0
    %v260 = vadd.f32 %v254, %v258
    %v261 = vadd.f32 %v255, %v258
    %262 = vst.msk [vmem:[#allocation2] sm:$0xff] %vm37, %v260
    %263 = vst.msk [vmem:[#allocation2 + $0x8] sm:$0xff] %vm37, %v261
    // Predicated region
    $region30: #{tpu_custom_call.1} parent=1 // pred_check
      _
    $region31: #{tpu_custom_call.1} parent=1 // pred_check_branch
      %265 = sbr.rel (0) target = $region33
    $region32: #{tpu_custom_call.1} parent=1 // pred_region
      %267 = vsyncadd [#allocation3], 0
      %s268 = sshll.u32 [#allocation2], 4
      %s269 = int_to_ptr.vmem [resolvable:$true] %s268
      %s270 = sshll.u32 %s7, 4
      %s271 = int_to_ptr.hbm [resolvable:$true] %s270
      %276 = dma.vmem_to_hbm [thread:$0]  %s269, 256, %s271, [#allocation3], 128, 128, 8
    $region33: #{tpu_custom_call.1} parent=1 // pred_fallthru
      _
    // Predicated region
    $region34: #{tpu_custom_call.1} parent=1 // pred_check
      _
    $region35: #{tpu_custom_call.1} parent=1 // pred_check_branch
      %278 = sbr.rel (0) target = $region37
    $region36: #{tpu_custom_call.1} parent=1 // pred_region
      %280 = dma.done [#allocation3], 256
    $region37: #{tpu_custom_call.1} parent=1 // pred_fallthru
      _
    %281 = vsyncpa [#allocation3], 1

</llo_original>
